<compile_context>
chip_gen: v5e
topology: v5e:2x2
jax: 0.10.0
libtpu: 0.0.40
codegen_flags: <defaults>
</compile_context>

<pallas_src>
import jax
import jax.numpy as jnp
from jax.experimental import pallas as pl
from jax.experimental.pallas import tpu as pltpu

OUT_ROWS = 16  # dist-head rows padded 3 -> 16 (bf16/f32 sublane-tile aligned)


def _round_up(x, m):
    return (x + m - 1) // m * m


def _default_vmem_limit_bytes():
    """Generation-aware scoped-VMEM limit: ~3/4 of physical, capped at 100 MiB.

    v7x (64 MiB)  -> 48 MiB,  v5e/v6e (128 MiB) -> 96 MiB.
    Falls back to a v7x-safe 48 MiB if the query is unavailable."""
    try:
        cap = int(pltpu.get_tpu_info().vmem_capacity_bytes)
    except Exception:
        cap = 64 * 1024 * 1024
    return min(cap * 3 // 4, 100 * 1024 * 1024)


def dist_att_kernel(xt_ref, wht_ref, bht_ref, wdt_ref, bdt_ref, ot_ref):
    # xt : (3E, TB) bf16   fused [neighbor | current | remote]^T activations
    # wht: (E, 3E)  bf16   packed hidden weight (zero off-blocks)
    # bht: (E, 1)   f32    packed hidden bias
    # wdt: (16, E)  bf16   dist-head weight, rows 3..15 zero
    # bdt: (16, 1)  f32    dist-head bias,   rows 3..15 zero
    # ot : (16, TB) f32    transposed output (batch on lanes, lane-dense)
    h = jnp.dot(wht_ref[...], xt_ref[...], preferred_element_type=jnp.float32)
    h = jnp.maximum(h + bht_ref[...], 0.0).astype(jnp.bfloat16)
    ot = jnp.dot(wdt_ref[...], h, preferred_element_type=jnp.float32)
    ot_ref[...] = (ot + bdt_ref[...]).astype(ot_ref.dtype)


def distance_attention_forward(neighbor, current, remote, packed_params, *,
                               block_b=None, vmem_limit_bytes=None,
                               force_kernel=False):
    wht, bht, wdt, bdt = packed_params
    B, E = neighbor.shape
    assert wht.shape == (E, 3 * E) and bht.shape == (E, 1)
    assert wdt.shape == (OUT_ROWS, E) and bdt.shape == (OUT_ROWS, 1)

    # Small-problem fallback: with a 1-step grid there is nothing to pipeline
    # and fixed per-call Pallas overhead exceeds a fused XLA matmul.
    if not force_kernel and B <= 128 and E <= 256:
        x = jnp.concatenate([neighbor, current, remote], axis=1)
        h = jax.nn.relu(x @ wht.T + bht[:, 0])
        return (h @ wdt.T + bdt[:, 0])[:, :3]

    if vmem_limit_bytes is None:
        vmem_limit_bytes = _default_vmem_limit_bytes()

    if block_b is None:
        # Resident weights (auto-pipelining still double-buffers constant-index
        # blocks), including lane/sublane padding of the skinny biases.
        resident = 2 * (2 * E * 3 * E                        # wht bf16
                        + 4 * 128 * _round_up(E, 8)          # bht f32 (lane-pad)
                        + 2 * OUT_ROWS * _round_up(E, 128)   # wdt bf16
                        + 4 * 128 * OUT_ROWS)                # bdt f32 (lane-pad)
        # Per batch column: double-buffered bf16 input + f32 output tiles plus
        # the in-kernel f32/bf16 hidden activation.
        per_col = (2 * (2 * _round_up(3 * E, 16) + 4 * OUT_ROWS)
                   + 6 * _round_up(E, 8))
        budget = vmem_limit_bytes - resident - (2 << 20)
        # TODO(synk): if E is so large that the resident packed weight alone
        # overflows scoped VMEM (E ~> 1500 on v7x), this needs a K-tiled grid
        # axis or manual weight-streaming DMA; out of scope for this module.
        block_b = budget // per_col if budget > 0 else 128

    block_b = max(128, min(int(block_b), 8192) // 128 * 128)
    b128 = _round_up(B, 128)
    if block_b >= b128:
        # Keep >=2 grid steps when the batch allows it so
        # dimension_semantics=("parallel",) can shard across v7x's 2 TCs.
        block_b = 128 if b128 <= 128 else max(128, (b128 // 2) // 128 * 128)
    Bp = _round_up(B, block_b)

    # One fused, bf16, transposed activation slab: (3E, Bp), batch on lanes.
    x = jnp.concatenate([neighbor, current, remote], axis=1).astype(jnp.bfloat16)
    if Bp != B:
        x = jnp.pad(x, ((0, Bp - B), (0, 0)))
    xt = x.T

    grid = (Bp // block_b,)

    def const_spec(shape):
        return pl.BlockSpec(shape, lambda i: (0, 0))  # VMEM-resident, DMA'd once

    flops = 2 * Bp * E * (3 * E + OUT_ROWS)
    bytes_accessed = (Bp * 3 * E * 2 + Bp * OUT_ROWS * 4
                      + 3 * E * E * 2 + E * 4 + OUT_ROWS * E * 2 + OUT_ROWS * 4)

    ot = pl.pallas_call(
        dist_att_kernel,
        out_shape=jax.ShapeDtypeStruct((OUT_ROWS, Bp), jnp.float32),
        grid=grid,
        in_specs=[
            pl.BlockSpec((3 * E, block_b), lambda i: (0, i)),  # activations
            const_spec((E, 3 * E)),       # packed hidden weight (bf16)
            const_spec((E, 1)),           # packed hidden bias (f32)
            const_spec((OUT_ROWS, E)),    # dist-head weight (bf16)
            const_spec((OUT_ROWS, 1)),    # dist-head bias (f32)
        ],
        out_specs=pl.BlockSpec((OUT_ROWS, block_b), lambda i: (0, i)),
        compiler_params=pltpu.CompilerParams(
            dimension_semantics=("parallel",),
            vmem_limit_bytes=vmem_limit_bytes),
        cost_estimate=pl.CostEstimate(
            flops=flops, transcendentals=0, bytes_accessed=bytes_accessed),
    )(xt, wht.astype(jnp.bfloat16), bht, wdt.astype(jnp.bfloat16), bdt)

    return ot[:3, :B].T


def init_params(key, emb_sz):
    """Deterministic init matching nn.Linear (uniform +/- 1/sqrt(fan_in)).

    Returns (packed, raw):
      packed = (Wh^T (E,3E), bh^T (E,1), Wd^T (16,E), bd^T (16,1)) for the kernel
      raw    = (Wn (2E,H), bn, Wr (2E,H), br, Wd (E,3), bd) for the reference.
    Raw weights are stored pre-transposed (in, out)."""
    E, H = emb_sz, emb_sz // 2
    ks = jax.random.split(key, 6)

    def lin(kw, kb, fan_in, fan_out):
        bound = 1.0 / jnp.sqrt(jnp.float32(fan_in))
        w = jax.random.uniform(kw, (fan_in, fan_out), jnp.float32, -bound, bound)
        b = jax.random.uniform(kb, (fan_out,), jnp.float32, -bound, bound)
        return w, b

    wn, bn = lin(ks[0], ks[1], 2 * E, H)   # neighbor_trans
    wr, br = lin(ks[2], ks[3], 2 * E, H)   # remote_trans
    wd, bd = lin(ks[4], ks[5], E, 3)       # dist_trans

    # Packed transposed hidden weight Wh^T (E, 3E):
    #   rows 0:H -> hn outputs, rows H:E -> hr outputs;
    #   cols 0:E act on neighbor, E:2E on current, 2E:3E on remote; off-blocks 0.
    wht = jnp.zeros((E, 3 * E), jnp.float32)
    wht = wht.at[0:H, 0:E].set(wn[0:E, :].T)
    wht = wht.at[0:H, E:2 * E].set(wn[E:2 * E, :].T)
    wht = wht.at[H:E, E:2 * E].set(wr[E:2 * E, :].T)
    wht = wht.at[H:E, 2 * E:3 * E].set(wr[0:E, :].T)
    bht = jnp.concatenate([bn, br])[:, None]                       # (E, 1)

    # Dist head, transposed and row-padded 3 -> 16.
    wdt = jnp.zeros((OUT_ROWS, E), jnp.float32).at[0:3, :].set(wd.T)
    bdt = jnp.zeros((OUT_ROWS, 1), jnp.float32).at[0:3, 0].set(bd)

    packed = (wht, bht, wdt, bdt)
    raw = (wn, bn, wr, br, wd, bd)
    return packed, raw


def reference_forward(neighbor, current, remote, raw_params):
    """Pure-JAX mirror of the PyTorch module's forward (full f32)."""
    wn, bn, wr, br, wd, bd = raw_params
    hn = jax.nn.relu(jnp.concatenate([neighbor, current], axis=1) @ wn + bn)
    hr = jax.nn.relu(jnp.concatenate([remote, current], axis=1) @ wr + br)
    return jnp.concatenate([hn, hr], axis=1) @ wd + bd


def reference_forward_bf16(neighbor, current, remote, raw_params):
    """Reference with the same bf16 quantization points as the kernel."""
    q = lambda a: a.astype(jnp.bfloat16).astype(jnp.float32)
    wn, bn, wr, br, wd, bd = raw_params
    hn = jax.nn.relu(jnp.concatenate([q(neighbor), q(current)], axis=1) @ q(wn) + bn)
    hr = jax.nn.relu(jnp.concatenate([q(remote), q(current)], axis=1) @ q(wr) + br)
    h = q(jnp.concatenate([hn, hr], axis=1))
    return h @ q(wd) + bd


# TODO(synk): the graph-BFS / landmark-sampling / file-shuffling utilities of the
# original module (gen_dist_tuple, read_dist_tuple_random, save/load, ...) are
# host-side data plumbing with no Pallas equivalent; only forward() is here.

if __name__ == "__main__":
    key = jax.random.PRNGKey(0)
    ks = jax.random.split(key, 8)

    fwd = jax.jit(distance_attention_forward,
                  static_argnames=("block_b", "vmem_limit_bytes", "force_kernel"))

    # ---- Case 1: tiny module-consistent shapes (emb_sz=32 -> hidden 16, out 3).
    B, E = 8, 32
    neighbor = jax.random.normal(ks[0], (B, E), jnp.float32)
    current = jax.random.normal(ks[1], (B, E), jnp.float32)
    remote = jax.random.normal(ks[2], (B, E), jnp.float32)
    packed, raw = init_params(ks[3], E)

    out = jax.block_until_ready(
        fwd(neighbor, current, remote, packed, force_kernel=True))
    assert out.shape == (B, 3)

    ref_q = reference_forward_bf16(neighbor, current, remote, raw)
    ref_f = reference_forward(neighbor, current, remote, raw)
    assert jnp.allclose(out, ref_q, atol=2e-3, rtol=2e-3)   # kernel numerics
    assert jnp.allclose(out, ref_f, atol=3e-2, rtol=3e-2)   # vs f32 module

    # Small-problem fallback path (fused XLA) should also match the module.
    out_fb = jax.block_until_ready(fwd(neighbor, current, remote, packed))
    assert out_fb.shape == (B, 3)
    assert jnp.allclose(out_fb, ref_f, atol=3e-2, rtol=3e-2)

    # ---- Case 2: multi-step grid with batch padding (pipelined kernel path).
    B2, E2 = 300, 64
    n2 = jax.random.normal(ks[4], (B2, E2), jnp.float32)
    c2 = jax.random.normal(ks[5], (B2, E2), jnp.float32)
    r2 = jax.random.normal(ks[6], (B2, E2), jnp.float32)
    packed2, raw2 = init_params(ks[7], E2)

    out2 = jax.block_until_ready(fwd(n2, c2, r2, packed2))
    assert out2.shape == (B2, 3)
    ref2_q = reference_forward_bf16(n2, c2, r2, raw2)
    ref2_f = reference_forward(n2, c2, r2, raw2)
    assert jnp.allclose(out2, ref2_q, atol=2e-3, rtol=2e-3)
    assert jnp.allclose(out2, ref2_f, atol=3e-2, rtol=3e-2)

    print("KERNEL_OK")
</pallas_src>

<mosaic_0001>
module attributes {stable_mosaic.version = 11 : i64} {
  func.func @dist_att_kernel(%arg0: i32, %arg1: memref<96x128xbf16, #tpu.memory_space<vmem>>, %arg2: memref<32x96xbf16, #tpu.memory_space<vmem>>, %arg3: memref<32x1xf32, #tpu.memory_space<vmem>>, %arg4: memref<16x32xbf16, #tpu.memory_space<vmem>>, %arg5: memref<16x1xf32, #tpu.memory_space<vmem>>, %arg6: memref<16x128xf32, #tpu.memory_space<vmem>>) attributes {dimension_semantics = [#tpu.dimension_semantics<parallel>], iteration_bounds = array<i64: 1>, scalar_prefetch = 0 : i64, scratch_operands = 0 : i64, tpu.core_type = #tpu.core_type<tc>, window_params = [{transform_indices = @transform_0, window_bounds = array<i64: 96, 128>}, {pipeline_mode = #tpu.pipeline_mode<synchronous>, transform_indices = @transform_1, window_bounds = array<i64: 32, 96>}, {pipeline_mode = #tpu.pipeline_mode<synchronous>, transform_indices = @transform_2, window_bounds = array<i64: 32, 1>}, {pipeline_mode = #tpu.pipeline_mode<synchronous>, transform_indices = @transform_3, window_bounds = array<i64: 16, 32>}, {pipeline_mode = #tpu.pipeline_mode<synchronous>, transform_indices = @transform_4, window_bounds = array<i64: 16, 1>}, {transform_indices = @transform_5, window_bounds = array<i64: 16, 128>}]} {
    %c0 = arith.constant 0 : index
    %c0_0 = arith.constant 0 : index
    %0 = vector.load %arg2[%c0, %c0_0] : memref<32x96xbf16, #tpu.memory_space<vmem>>, vector<32x96xbf16>
    %c0_1 = arith.constant 0 : index
    %c0_2 = arith.constant 0 : index
    %1 = vector.load %arg1[%c0_1, %c0_2] : memref<96x128xbf16, #tpu.memory_space<vmem>>, vector<96x128xbf16>
    %cst = arith.constant dense<0.000000e+00> : vector<32x128xf32>
    %2 = tpu.matmul %0, %1, %cst {dimension_numbers = #tpu.dot_dimension_numbers<[1], [0], [0], [1], [0, 0, 1, 1], [], []>} : vector<32x96xbf16>, vector<96x128xbf16>, vector<32x128xf32> -> vector<32x128xf32>
    %c0_3 = arith.constant 0 : index
    %c0_4 = arith.constant 0 : index
    %3 = vector.load %arg3[%c0_3, %c0_4] : memref<32x1xf32, #tpu.memory_space<vmem>>, vector<32x1xf32>
    %4 = vector.broadcast %3 : vector<32x1xf32> to vector<32x128xf32>
    %5 = arith.addf %2, %4 : vector<32x128xf32>
    %cst_5 = arith.constant 0.000000e+00 : f32
    %6 = vector.broadcast %cst_5 : f32 to vector<32x128xf32>
    %7 = arith.maximumf %5, %6 : vector<32x128xf32>
    %8 = arith.truncf %7 : vector<32x128xf32> to vector<32x128xbf16>
    %c0_6 = arith.constant 0 : index
    %c0_7 = arith.constant 0 : index
    %9 = vector.load %arg4[%c0_6, %c0_7] : memref<16x32xbf16, #tpu.memory_space<vmem>>, vector<16x32xbf16>
    %cst_8 = arith.constant dense<0.000000e+00> : vector<16x128xf32>
    %10 = tpu.matmul %9, %8, %cst_8 {dimension_numbers = #tpu.dot_dimension_numbers<[1], [0], [0], [1], [0, 0, 1, 1], [], []>} : vector<16x32xbf16>, vector<32x128xbf16>, vector<16x128xf32> -> vector<16x128xf32>
    %c0_9 = arith.constant 0 : index
    %c0_10 = arith.constant 0 : index
    %11 = vector.load %arg5[%c0_9, %c0_10] : memref<16x1xf32, #tpu.memory_space<vmem>>, vector<16x1xf32>
    %12 = vector.broadcast %11 : vector<16x1xf32> to vector<16x128xf32>
    %13 = arith.addf %10, %12 : vector<16x128xf32>
    %c0_11 = arith.constant 0 : index
    %c0_12 = arith.constant 0 : index
    %14 = vector.load %arg6[%c0_11, %c0_12] : memref<16x128xf32, #tpu.memory_space<vmem>>, vector<16x128xf32>
    tpu.vector_store %arg6[%c0_11, %c0_12], %13 {strides = array<i32>} : memref<16x128xf32, #tpu.memory_space<vmem>>, vector<16x128xf32>,
    return
  }
  func.func @transform_0(%arg0: i32) -> (i32, i32) {
    %c0_i32 = arith.constant 0 : i32
    %c0_i32_0 = arith.constant 0 : i32
    return %c0_i32, %arg0 : i32, i32
  }
  func.func @transform_1(%arg0: i32) -> (i32, i32) {
    %c0_i32 = arith.constant 0 : i32
    %c0_i32_0 = arith.constant 0 : i32
    %c0_i32_1 = arith.constant 0 : i32
    return %c0_i32, %c0_i32_0 : i32, i32
  }
  func.func @transform_2(%arg0: i32) -> (i32, i32) {
    %c0_i32 = arith.constant 0 : i32
    %c0_i32_0 = arith.constant 0 : i32
    %c0_i32_1 = arith.constant 0 : i32
    return %c0_i32, %c0_i32_0 : i32, i32
  }
  func.func @transform_3(%arg0: i32) -> (i32, i32) {
    %c0_i32 = arith.constant 0 : i32
    %c0_i32_0 = arith.constant 0 : i32
    %c0_i32_1 = arith.constant 0 : i32
    return %c0_i32, %c0_i32_0 : i32, i32
  }
  func.func @transform_4(%arg0: i32) -> (i32, i32) {
    %c0_i32 = arith.constant 0 : i32
    %c0_i32_0 = arith.constant 0 : i32
    %c0_i32_1 = arith.constant 0 : i32
    return %c0_i32, %c0_i32_0 : i32, i32
  }
  func.func @transform_5(%arg0: i32) -> (i32, i32) {
    %c0_i32 = arith.constant 0 : i32
    %c0_i32_0 = arith.constant 0 : i32
    return %c0_i32, %arg0 : i32, i32
  }
}

</mosaic_0001>

<llo_original>
// kernel: distance_attention_forward.1
$region0: #{distance_attention_forward.1}
  #allocation0 [shape = 'u32[]', space=smem, size = 0x4, offset = 0x4, fixed_abs, tag = 'smem constant byte address 0x4 - core index']
  #allocation1 [shape = 'u32[72,128]{1,0:T(1,128)}', space=vmem, size = 0x9000, scoped, tag = 'internal scratch']
  %s0 = inlined_call_operand.vmem [shape: bf16[96,128], index: 0, kind: input, shape index: {}]
  %s1 = inlined_call_operand.vmem [shape: bf16[32,96], index: 1, kind: input, shape index: {}]
  %s2 = inlined_call_operand.vmem [shape: f32[32,1], index: 2, kind: input, shape index: {}]
  %s3 = inlined_call_operand.vmem [shape: bf16[16,32], index: 3, kind: input, shape index: {}]
  %s4 = inlined_call_operand.vmem [shape: f32[16,1], index: 4, kind: input, shape index: {}]
  %s5 = inlined_call_operand.vmem [shape: f32[16,128], index: 5, kind: output, shape index: {}]
  %s6 = sld [smem:[#allocation0]]
  $region30: #{distance_attention_forward.1} parent=0
    _
  %s8 = ssub.s32 1, %s6
  %s9 = scalar_select 0, %s8, %s6
  // Predicated region
  $region2: #{distance_attention_forward.1} parent=0 // pred_check
    _
  $region3: #{distance_attention_forward.1} parent=0 // pred_check_branch
    %11 = sbr.rel (0) target = $region5
  $region4: #{distance_attention_forward.1} parent=0 // pred_region
    _
  $region5: #{distance_attention_forward.1} parent=0 // pred_fallthru
    _
  // Predicated region
  $region6: #{distance_attention_forward.1} parent=0 // pred_check
    _
  $region7: #{distance_attention_forward.1} parent=0 // pred_check_branch
    %13 = sbr.rel (0) target = $region9
  $region8: #{distance_attention_forward.1} parent=0 // pred_region
    _
  $region9: #{distance_attention_forward.1} parent=0 // pred_fallthru
    _
  // Predicated region
  $region10: #{distance_attention_forward.1} parent=0 // pred_check
    _
  $region11: #{distance_attention_forward.1} parent=0 // pred_check_branch
    %15 = sbr.rel (0) target = $region13
  $region12: #{distance_attention_forward.1} parent=0 // pred_region
    _
  $region13: #{distance_attention_forward.1} parent=0 // pred_fallthru
    _
  // Predicated region
  $region14: #{distance_attention_forward.1} parent=0 // pred_check
    _
  $region15: #{distance_attention_forward.1} parent=0 // pred_check_branch
    %17 = sbr.rel (0) target = $region17
  $region16: #{distance_attention_forward.1} parent=0 // pred_region
    _
  $region17: #{distance_attention_forward.1} parent=0 // pred_fallthru
    _
  // Predicated region
  $region18: #{distance_attention_forward.1} parent=0 // pred_check
    _
  $region19: #{distance_attention_forward.1} parent=0 // pred_check_branch
    %19 = sbr.rel (0) target = $region21
  $region20: #{distance_attention_forward.1} parent=0 // pred_region
    _
  $region21: #{distance_attention_forward.1} parent=0 // pred_fallthru
    _
  %v21 = vld [vmem:[%s1] sm:$0xf]
  %v22 = vld [vmem:[%s1 + $0x4] sm:$0xf]
  %v23 = vld [vmem:[%s1 + $0x8] sm:$0xf]
  %v24 = vld [vmem:[%s1 + $0xc] sm:$0xf]
  %v25 = vld [vmem:[%s0] sm:$0xf]
  %v26 = vld [vmem:[%s0 + $0x4] sm:$0xf]
  %v27 = vld [vmem:[%s0 + $0x8] sm:$0xf]
  %v28 = vld [vmem:[%s0 + $0xc] sm:$0xf]
  %v29 = vld [vmem:[%s0 + $0x10] sm:$0xf]
  %v30 = vld [vmem:[%s0 + $0x14] sm:$0xf]
  %v31 = vld [vmem:[%s0 + $0x18] sm:$0xf]
  %v32 = vld [vmem:[%s0 + $0x1c] sm:$0xf]
  %v33 = vld [vmem:[%s0 + $0x20] sm:$0xf]
  %v34 = vld [vmem:[%s0 + $0x24] sm:$0xf]
  %v35 = vld [vmem:[%s0 + $0x28] sm:$0xf]
  %v36 = vld [vmem:[%s0 + $0x2c] sm:$0xf]
  %v37 = vld [vmem:[%s2] sm:$0xff]
  %v38 = vld [vmem:[%s2 + $0x8] sm:$0xff]
  %v39 = vld [vmem:[%s2 + $0x10] sm:$0xff]
  %v40 = vld [vmem:[%s2 + $0x18] sm:$0xff]
  %42 = vset.pattern.permute.xlu0 0
  %43 = vperm.xlu0 %42, %v37
  %v44 = vpop.permute.xlu0 %43
  %47 = vset.pattern.permute.xlu0 0
  %48 = vperm.xlu0 %47, %v38
  %v49 = vpop.permute.xlu0 %48
  %52 = vset.pattern.permute.xlu0 0
  %53 = vperm.xlu0 %52, %v39
  %v54 = vpop.permute.xlu0 %53
  %57 = vset.pattern.permute.xlu0 0
  %58 = vperm.xlu0 %57, %v40
  %v59 = vpop.permute.xlu0 %58
  %v65 = vunpack.c.l.b16 %v21
  %v66 = vunpack.c.l.b16 %v22
  %v67 = vunpack.c.l.b16 %v23
  %v68 = vunpack.c.l.b16 %v24
  %v69 = vpack.c.b16 %v66, %v65
  %v70 = vpack.c.b16 %v68, %v67
  %v83 = vunpack.c.l.b16 %v25
  %v84 = vunpack.c.l.b16 %v26
  %v85 = vunpack.c.l.b16 %v27
  %v86 = vunpack.c.l.b16 %v28
  %v87 = vunpack.c.l.b16 %v29
  %v88 = vunpack.c.l.b16 %v30
  %v89 = vunpack.c.l.b16 %v31
  %v90 = vunpack.c.l.b16 %v32
  %v91 = vunpack.c.l.b16 %v33
  %v92 = vunpack.c.l.b16 %v34
  %v93 = vunpack.c.l.b16 %v35
  %v94 = vunpack.c.l.b16 %v36
  %v95 = vpack.c.b16 %v84, %v83
  %v96 = vpack.c.b16 %v86, %v85
  %v97 = vpack.c.b16 %v88, %v87
  %v98 = vpack.c.b16 %v90, %v89
  %v99 = vpack.c.b16 %v92, %v91
  %v100 = vpack.c.b16 %v94, %v93
  %vm107 = vcmask 785408
  %v109 = vsel %vm107, %v69, 0
  %v112 = vsel %vm107, %v70, 0
  %114 = vmatpush.bf16.msra.mxu0 0
  %115 = vmatpush.bf16.msra.mxu0 0
  %116 = vmatpush.bf16.msra.mxu0 %v100
  %117 = vmatpush.bf16.msra.mxu0 %v99
  %118 = vmatpush.bf16.msra.mxu0 %v98
  %119 = vmatpush.bf16.msra.mxu0 %v97
  %120 = vmatpush.bf16.msra.mxu0 %v96
  %121 = vmatpush.bf16.msra.mxu0 %v95
  %122 = vmatmul.bf16.gmra.mxu0 %v109
  %v123 = vpop.f32.mrf.mxu0
  %v124 = vadd.f32 %v44, %v123
  %v125 = vpop.f32.mrf.mxu0
  %v126 = vadd.f32 %v49, %v125
  %127 = vmatmul.bf16.gmra.mxu0 %v112
  %v128 = vpop.f32.mrf.mxu0
  %v129 = vadd.f32 %v54, %v128
  %v130 = vpop.f32.mrf.mxu0
  %v131 = vadd.f32 %v59, %v130
  %132 = vdwg.mxu0
  %v133 = vmax.f32 %v124, 0.0
  %v134 = vmax.f32 %v126, 0.0
  %v135 = vmax.f32 %v129, 0.0
  %v136 = vmax.f32 %v131, 0.0
  %v137 = vpack.c.bf16 %v134, %v133
  %v138 = vpack.c.bf16 %v136, %v135
  %v139 = vld [vmem:[%s3] sm:$0xf]
  %v140 = vld [vmem:[%s3 + $0x4] sm:$0xf]
  %v141 = vld [vmem:[%s4] sm:$0xff]
  %v142 = vld [vmem:[%s4 + $0x8] sm:$0xff]
  %144 = vset.pattern.permute.xlu0 0
  %145 = vperm.xlu0 %144, %v141
  %v146 = vpop.permute.xlu0 %145
  %149 = vset.pattern.permute.xlu0 0
  %150 = vperm.xlu0 %149, %v142
  %v151 = vpop.permute.xlu0 %150
  %v155 = vunpack.c.l.b16 %v139
  %v156 = vunpack.c.l.b16 %v140
  %v157 = vpack.c.b16 %v156, %v155
  %vm158 = vcmask 261120
  %v160 = vsel %vm158, %v157, 0
  %162 = vmatpush.bf16.msra.mxu0 0
  %163 = vmatpush.bf16.msra.mxu0 0
  %164 = vmatpush.bf16.msra.mxu0 0
  %165 = vmatpush.bf16.msra.mxu0 0
  %166 = vmatpush.bf16.msra.mxu0 0
  %167 = vmatpush.bf16.msra.mxu0 0
  %168 = vmatpush.bf16.msra.mxu0 %v138
  %169 = vmatpush.bf16.msra.mxu0 %v137
  %170 = vmatmul.bf16.gmra.mxu0 %v160
  %v171 = vpop.f32.mrf.mxu0
  %v172 = vadd.f32 %v146, %v171
  %v173 = vpop.f32.mrf.mxu0
  %v174 = vadd.f32 %v151, %v173
  %175 = vdwg.mxu0
  %176 = vst [vmem:[%s5] sm:$0xff] %v172
  %177 = vst [vmem:[%s5 + $0x8] sm:$0xff] %v174
  // Predicated region
  $region22: #{distance_attention_forward.1} parent=0 // pred_check
    _
  $region23: #{distance_attention_forward.1} parent=0 // pred_check_branch
    %179 = sbr.rel (0) target = $region25
  $region24: #{distance_attention_forward.1} parent=0 // pred_region
    _
  $region25: #{distance_attention_forward.1} parent=0 // pred_fallthru
    _
  // Predicated region
  $region26: #{distance_attention_forward.1} parent=0 // pred_check
    _
  $region27: #{distance_attention_forward.1} parent=0 // pred_check_branch
    %181 = sbr.rel (0) target = $region29
  $region28: #{distance_attention_forward.1} parent=0 // pred_region
    _
  $region29: #{distance_attention_forward.1} parent=0 // pred_fallthru
    _

</llo_original>
